<compile_context>
chip_gen: v5e
topology: v5e:2x2
jax: 0.10.0
libtpu: 0.0.40
codegen_flags: <defaults>
</compile_context>

<pallas_src>
import functools
import math

import jax
import jax.numpy as jnp
import numpy as np
from jax import lax
from jax.experimental import pallas as pl
from jax.experimental.pallas import tpu as pltpu


def _round_up(x, m):
    return (x + m - 1) // m * m


def _hgnn_kernel(kneigs_ref,          # SMEM scalar prefetch: (B,) int32
                 image_ref,           # (Nip, Cp)  f32   (batch dim squeezed, resident over t)
                 text_ref,            # (tn, Ep)   bf16  text tile
                 wf_ref,              # (Ep, 2*Cp) bf16  fused [emb1/sqrt(C) | out] weights
                 bf_ref,              # (1, 2*Cp)  f32   fused biases
                 s2_ref, t2_ref,      # (1, Cp)    f32   folded final BN affine
                 out_ref,             # (Nip, Cp)  f32   block-resident accumulator / output
                 img_bf_ref,          # VMEM scratch (Nip, Cp) bf16
                 *, nt_valid, ni_valid, col_mask_needed, row_mask_needed):
    b = pl.program_id(0)
    t = pl.program_id(1)
    ni, cp = image_ref.shape
    tn = text_ref.shape[0]

    K = kneigs_ref[b]
    K_f = K.astype(jnp.float32)

    @pl.when(t == 0)
    def _():
        out_ref[...] = jnp.zeros_like(out_ref)
        img_bf_ref[...] = image_ref[...].astype(jnp.bfloat16)   # cast once per batch

    # Fused projection [emb1 | self.out]: one MXU pass -> (tn, 2*Cp) f32.
    proj = jnp.dot(text_ref[...], wf_ref[...],
                   preferred_element_type=jnp.float32) + bf_ref[...]
    # emb1 branch (conv1x1 + BN folded + ReLU), pre-scaled by 1/sqrt(C) in the wrapper.
    text_emb = jnp.maximum(proj[:, :cp], 0.0).astype(jnp.bfloat16)
    text_out = proj[:, cp:]                                      # self.out branch

    # Attention logits for this text tile: (Ni, tn) f32 (1/sqrt(C) already folded in).
    attn = lax.dot_general(img_bf_ref[...], text_emb,
                           dimension_numbers=(((1,), (1,)), ((), ())),
                           preferred_element_type=jnp.float32)

    if row_mask_needed:      # padded image rows must never win the top-K / softmax
        rows = lax.broadcasted_iota(jnp.int32, (ni, tn), 0)
        attn = jnp.where(rows < ni_valid, attn, -1e30)

    # ---- exact per-column top-K threshold --------------------------------------------
    # Order-preserving f32 -> int32 keys, then a 32-pass binary search per column for the
    # K-th largest key (count-above-threshold); compares on the VPU, reductions on XLU.
    bits = pltpu.bitcast(attn, jnp.int32)
    i32_min = jnp.int32(jnp.iinfo(jnp.int32).min)
    keys = jnp.where(bits >= 0, bits, i32_min - bits)

    def bs_body(_, lohi):
        lo, hi = lohi
        mid = (lo & hi) + ((lo ^ hi) >> 1)            # overflow-safe floor((lo+hi)/2)
        cnt = jnp.sum((keys >= mid).astype(jnp.float32), axis=0, keepdims=True)
        ok = cnt >= K_f
        return jnp.where(ok, mid, lo), jnp.where(ok, hi, mid)

    lo0 = jnp.full((1, tn), jnp.iinfo(jnp.int32).min, jnp.int32)
    hi0 = jnp.full((1, tn), jnp.iinfo(jnp.int32).max, jnp.int32)
    kth, _ = lax.fori_loop(0, 32, bs_body, (lo0, hi0))

    gt = keys > kth
    eq = keys == kth
    c_gt = jnp.sum(gt.astype(jnp.float32), axis=0, keepdims=True)

    # Tie cleanup: keep the lowest-index ties first (torch.topk / stable argsort order).
    # Exclusive within-tie prefix count = strictly-lower-triangular matmul on the MXU.
    ri = lax.broadcasted_iota(jnp.int32, (ni, ni), 0)
    ci = lax.broadcasted_iota(jnp.int32, (ni, ni), 1)
    tril = (ci < ri).astype(jnp.bfloat16)
    tie_rank = c_gt + jnp.dot(tril, eq.astype(jnp.bfloat16),
                              preferred_element_type=jnp.float32)
    mask = jnp.where(gt | (eq & (tie_rank < K_f)), 1.0, 0.0)

    if col_mask_needed:      # zero the zero-padded text columns of the last tile
        cols = lax.broadcasted_iota(jnp.int32, (1, tn), 1) + t * tn
        mask = mask * (cols < nt_valid).astype(jnp.float32)

    # Softmax over the image-token axis (torch dim=-2); reciprocal on the EUP.
    m = jnp.max(attn, axis=0, keepdims=True)
    e = jnp.exp(attn - m)
    p = e * pl.reciprocal(jnp.sum(e, axis=0, keepdims=True), approx=True)
    attn_topk = p * mask

    # Aggregate this text tile: (Ni, tn) @ (tn, Cp), accumulated in the resident f32 out.
    out_ref[...] += jnp.dot(attn_topk.astype(jnp.bfloat16),
                            text_out.astype(jnp.bfloat16),
                            preferred_element_type=jnp.float32)

    @pl.when(t == pl.num_programs(1) - 1)
    def _():
        # folded final BN (eval) + ReLU + residual
        res = jnp.maximum(out_ref[...] * s2_ref[...] + t2_ref[...], 0.0) + image_ref[...]
        out_ref[...] = res.astype(out_ref.dtype)


def hgnn_layer(image, text, k, params, *, tn=None):
    """image: (B, Ni, C) f32, text: (B, Nt, E) f32, k: (B,) f32.
    params = (w1t (E,C), b1f (1,C), wot (E,C), bo (1,C), s2 (1,C), t2 (1,C)) f32,
    with both BatchNorms already folded in eval mode."""
    B, Ni, C = image.shape
    _, Nt, E = text.shape
    w1t, b1f, wot, bo, s2, t2 = params

    # Fold 1/sqrt(C) into the emb1 branch (ReLU commutes with a positive scale).
    inv_sqrt_c = 1.0 / math.sqrt(C)
    w1t = w1t * inv_sqrt_c
    b1f = b1f * inv_sqrt_c

    # Lane-dense padding: C, E, Nt -> multiples of 128; Ni -> multiple of 8.
    Cp = _round_up(C, 128)
    Ep = _round_up(E, 128)
    Nip = _round_up(Ni, 8)
    Ntp = _round_up(Nt, 128)

    def resident_bytes(tn_):
        return (2 * Nip * Cp * 4        # image f32 (double buffered)
                + 2 * Nip * Cp * 4      # output f32 (double buffered)
                + Nip * Cp * 2          # bf16 image scratch
                + 2 * tn_ * Ep * 2      # text tile bf16 (double buffered)
                + 2 * Ep * 2 * Cp * 2   # fused weights bf16 (double buffered)
                + 16 * Cp * 4)          # biases / BN affines

    # Text tile: the largest multiple of 128 dividing padded Nt, capped at 512 and at a
    # ~48 MiB resident set so the same config also fits v5e / v7x VMEM budgets.
    candidates = [c for c in range(min(Ntp, 512), 127, -128) if Ntp % c == 0]
    if tn is None:
        tn = next((c for c in candidates if resident_bytes(c) <= (48 << 20)),
                  candidates[-1])
    if tn % 128 != 0 or Ntp % tn != 0:
        raise ValueError("tn must be a multiple of 128 that divides the padded Nt")
    n_t = Ntp // tn

    # Fuse [emb1 (conv1x1 + BN folded, pre-scaled) | self.out] into one (Ep, 2*Cp) weight.
    wf = jnp.zeros((Ep, 2 * Cp), jnp.float32)
    wf = wf.at[:E, :C].set(w1t).at[:E, Cp:Cp + C].set(wot)
    bf = jnp.zeros((1, 2 * Cp), jnp.float32)
    bf = bf.at[:, :C].set(b1f).at[:, Cp:Cp + C].set(bo)
    s2p = jnp.zeros((1, Cp), jnp.float32).at[:, :C].set(s2)
    t2p = jnp.zeros((1, Cp), jnp.float32).at[:, :C].set(t2)

    img_p = jnp.pad(image.astype(jnp.float32), ((0, 0), (0, Nip - Ni), (0, Cp - C)))
    txt_p = jnp.pad(text, ((0, 0), (0, Ntp - Nt), (0, Ep - E))).astype(jnp.bfloat16)
    wf_bf = wf.astype(jnp.bfloat16)

    # K_neigs = round(image.shape[1] * k * alpha), alpha = 1 (uses the true Ni).
    K_neigs = jnp.round(Ni * k).astype(jnp.int32)          # (B,)

    kernel = functools.partial(
        _hgnn_kernel,
        nt_valid=Nt, ni_valid=Ni,
        col_mask_needed=(Ntp != Nt), row_mask_needed=(Nip != Ni))

    grid_spec = pltpu.PrefetchScalarGridSpec(
        num_scalar_prefetch=1,
        grid=(B, n_t),
        in_specs=[
            pl.BlockSpec((None, Nip, Cp), lambda b, t, kn: (b, 0, 0)),  # image (resident over t)
            pl.BlockSpec((None, tn, Ep), lambda b, t, kn: (b, t, 0)),   # text tile
            pl.BlockSpec((Ep, 2 * Cp), lambda b, t, kn: (0, 0)),        # fused weights
            pl.BlockSpec((1, 2 * Cp), lambda b, t, kn: (0, 0)),         # fused biases
            pl.BlockSpec((1, Cp), lambda b, t, kn: (0, 0)),             # s2 (folded BN scale)
            pl.BlockSpec((1, Cp), lambda b, t, kn: (0, 0)),             # t2 (folded BN shift)
        ],
        out_specs=pl.BlockSpec((None, Nip, Cp), lambda b, t, kn: (b, 0, 0)),
        scratch_shapes=[
            pltpu.VMEM((Nip, Cp), jnp.bfloat16),   # bf16 image, cast once per batch
        ],
    )

    out_p = pl.pallas_call(
        kernel,
        out_shape=jax.ShapeDtypeStruct((B, Nip, Cp), image.dtype),
        grid_spec=grid_spec,
        compiler_params=pltpu.CompilerParams(
            dimension_semantics=("parallel", "arbitrary"),
            vmem_limit_bytes=64 * 1024 * 1024),
    )(K_neigs, img_p, txt_p, wf_bf, bf, s2p, t2p)

    return out_p[:, :Ni, :C]


def init_params(in_ch, embed_dim, key):
    """Deterministic synthetic parameters (PyTorch-default BN stats, eval mode)."""
    ks = jax.random.split(key, 4)
    W1 = jax.random.normal(ks[0], (in_ch, embed_dim), jnp.float32) * 0.05  # Conv1d weight (k=1)
    b1 = jax.random.normal(ks[1], (in_ch,), jnp.float32) * 0.05
    Wo = jax.random.normal(ks[2], (in_ch, embed_dim), jnp.float32) * 0.05  # Linear weight
    bo = jax.random.normal(ks[3], (in_ch,), jnp.float32) * 0.05
    eps = 1e-5
    # BatchNorm1d defaults: gamma=1, beta=0, running_mean=0, running_var=1
    s1 = jnp.ones((in_ch,)) / jnp.sqrt(jnp.ones((in_ch,)) + eps)
    t1 = jnp.zeros((in_ch,))
    s2 = jnp.ones((in_ch,)) / jnp.sqrt(jnp.ones((in_ch,)) + eps)
    t2 = jnp.zeros((in_ch,))
    # fold conv + BN1:  (x @ W1.T + b1) * s1 + t1  ==  x @ (W1 * s1[:,None]).T + (b1*s1 + t1)
    W1f = W1 * s1[:, None]
    b1f = b1 * s1 + t1
    return (W1f.T, b1f.reshape(1, -1), Wo.T, bo.reshape(1, -1),
            s2.reshape(1, -1), t2.reshape(1, -1))


def reference(image, text, k, params):
    """Pure-JAX reference with the same eval-mode folding and the same bf16-operand /
    f32-accumulate matmul numerics as the kernel (so the top-K selection agrees)."""
    w1t, b1f, wot, bo, s2, t2 = params
    B, Ni, C = image.shape
    inv_sqrt_c = 1.0 / math.sqrt(C)
    K_neigs = jnp.round(Ni * k).astype(jnp.int32)
    txt_bf = text.astype(jnp.bfloat16)
    w1s = (w1t * inv_sqrt_c).astype(jnp.bfloat16)
    b1s = b1f * inv_sqrt_c
    text_emb = jax.nn.relu(
        jnp.einsum('bte,ec->btc', txt_bf, w1s,
                   preferred_element_type=jnp.float32) + b1s)               # (B, Nt, C)
    attn = jnp.einsum('bic,btc->bit', image.astype(jnp.bfloat16),
                      text_emb.astype(jnp.bfloat16),
                      preferred_element_type=jnp.float32)                   # (B, Ni, Nt)
    order = jnp.argsort(-attn, axis=1)                                      # stable, descending
    rank = jnp.argsort(order, axis=1)
    mask = (rank < K_neigs[:, None, None]).astype(jnp.float32)
    sm = jax.nn.softmax(attn, axis=1)                                       # softmax over dim=-2
    attn_topk = sm * mask
    text_out = jnp.einsum('bte,ec->btc', txt_bf, wot.astype(jnp.bfloat16),
                          preferred_element_type=jnp.float32) + bo
    out = jnp.einsum('bit,btc->bic', attn_topk.astype(jnp.bfloat16),
                     text_out.astype(jnp.bfloat16),
                     preferred_element_type=jnp.float32)
    return jax.nn.relu(out * s2 + t2) + image


if __name__ == "__main__":
    B, Ni, Nt = 2, 16, 8
    in_ch, embed_dim = 32, 64

    key = jax.random.PRNGKey(0)
    k_img, k_txt, k_par = jax.random.split(key, 3)
    image = jax.random.normal(k_img, (B, Ni, in_ch), jnp.float32)
    text = jax.random.normal(k_txt, (B, Nt, embed_dim), jnp.float32)
    k = jnp.array([0.25, 0.5], jnp.float32)       # per-batch neighbor fraction

    params = init_params(in_ch, embed_dim, k_par)

    out = hgnn_layer(image, text, k, params)
    out = jax.block_until_ready(out)

    ref = reference(image, text, k, params)
    np.testing.assert_allclose(np.asarray(out), np.asarray(ref), rtol=1e-2, atol=1e-2)
    print("KERNEL_OK")
</pallas_src>

<mosaic_0001>
module attributes {stable_mosaic.version = 11 : i64} {
  func.func @_hgnn_kernel(%arg0: i32, %arg1: i32, %arg2: memref<2xi32, #tpu.memory_space<smem>>, %arg3: memref<1x16x128xf32, #tpu.memory_space<vmem>>, %arg4: memref<1x128x128xbf16, #tpu.memory_space<vmem>>, %arg5: memref<128x256xbf16, #tpu.memory_space<vmem>>, %arg6: memref<1x256xf32, #tpu.memory_space<vmem>>, %arg7: memref<1x128xf32, #tpu.memory_space<vmem>>, %arg8: memref<1x128xf32, #tpu.memory_space<vmem>>, %arg9: memref<1x16x128xf32, #tpu.memory_space<vmem>>, %arg10: memref<16x128xbf16, #tpu.memory_space<vmem>>) attributes {dimension_semantics = [#tpu.dimension_semantics<parallel>, #tpu.dimension_semantics<arbitrary>], iteration_bounds = array<i64: 2, 1>, scalar_prefetch = 1 : i64, scratch_operands = 1 : i64, tpu.core_type = #tpu.core_type<tc>, window_params = [{transform_indices = @transform_0, window_bounds = array<i64: 1, 16, 128>}, {transform_indices = @transform_1, window_bounds = array<i64: 1, 128, 128>}, {pipeline_mode = #tpu.pipeline_mode<synchronous>, transform_indices = @transform_2, window_bounds = array<i64: 128, 256>}, {pipeline_mode = #tpu.pipeline_mode<synchronous>, transform_indices = @transform_3, window_bounds = array<i64: 1, 256>}, {pipeline_mode = #tpu.pipeline_mode<synchronous>, transform_indices = @transform_4, window_bounds = array<i64: 1, 128>}, {pipeline_mode = #tpu.pipeline_mode<synchronous>, transform_indices = @transform_5, window_bounds = array<i64: 1, 128>}, {transform_indices = @transform_6, window_bounds = array<i64: 1, 16, 128>}]} {
    %0 = arith.index_cast %arg0 : i32 to index
    %1 = memref.load %arg2[%0] : memref<2xi32, #tpu.memory_space<smem>>
    %2 = arith.sitofp %1 : i32 to f32
    %c0_i32 = arith.constant 0 : i32
    %3 = arith.cmpi eq, %arg1, %c0_i32 : i32
    %4 = arith.extui %3 : i1 to i32
    %c0_i32_0 = arith.constant 0 : i32
    %5 = arith.cmpi ne, %4, %c0_i32_0 : i32
    scf.if %5 {
      %cst_29 = arith.constant 0.000000e+00 : f32
      %90 = vector.broadcast %cst_29 : f32 to vector<16x128xf32>
      %c0_30 = arith.constant 0 : index
      %c0_31 = arith.constant 0 : index
      %c0_32 = arith.constant 0 : index
      %91 = vector.load %arg9[%c0_30, %c0_31, %c0_32] : memref<1x16x128xf32, #tpu.memory_space<vmem>>, vector<1x16x128xf32>
      %92 = vector.shape_cast %91 : vector<1x16x128xf32> to vector<16x128xf32>
      %93 = vector.shape_cast %90 : vector<16x128xf32> to vector<1x16x128xf32>
      tpu.vector_store %arg9[%c0_30, %c0_31, %c0_32], %93 {strides = array<i32>} : memref<1x16x128xf32, #tpu.memory_space<vmem>>, vector<1x16x128xf32>,
      %c0_33 = arith.constant 0 : index
      %c0_34 = arith.constant 0 : index
      %c0_35 = arith.constant 0 : index
      %94 = vector.load %arg3[%c0_33, %c0_34, %c0_35] : memref<1x16x128xf32, #tpu.memory_space<vmem>>, vector<1x16x128xf32>
      %95 = vector.shape_cast %94 : vector<1x16x128xf32> to vector<16x128xf32>
      %96 = arith.truncf %95 : vector<16x128xf32> to vector<16x128xbf16>
      %c0_36 = arith.constant 0 : index
      %c0_37 = arith.constant 0 : index
      %97 = vector.load %arg10[%c0_36, %c0_37] : memref<16x128xbf16, #tpu.memory_space<vmem>>, vector<16x128xbf16>
      tpu.vector_store %arg10[%c0_36, %c0_37], %96 {strides = array<i32>} : memref<16x128xbf16, #tpu.memory_space<vmem>>, vector<16x128xbf16>,
    } else {
    }
    %c0 = arith.constant 0 : index
    %c0_1 = arith.constant 0 : index
    %c0_2 = arith.constant 0 : index
    %6 = vector.load %arg4[%c0, %c0_1, %c0_2] : memref<1x128x128xbf16, #tpu.memory_space<vmem>>, vector<1x128x128xbf16>
    %7 = vector.shape_cast %6 : vector<1x128x128xbf16> to vector<128x128xbf16>
    %c0_3 = arith.constant 0 : index
    %c0_4 = arith.constant 0 : index
    %8 = vector.load %arg5[%c0_3, %c0_4] : memref<128x256xbf16, #tpu.memory_space<vmem>>, vector<128x256xbf16>
    %cst = arith.constant dense<0.000000e+00> : vector<128x256xf32>
    %9 = tpu.matmul %7, %8, %cst {dimension_numbers = #tpu.dot_dimension_numbers<[1], [0], [0], [1], [0, 0, 1, 1], [], []>} : vector<128x128xbf16>, vector<128x256xbf16>, vector<128x256xf32> -> vector<128x256xf32>
    %c0_5 = arith.constant 0 : index
    %c0_6 = arith.constant 0 : index
    %10 = vector.load %arg6[%c0_5, %c0_6] : memref<1x256xf32, #tpu.memory_space<vmem>>, vector<1x256xf32>
    %11 = vector.broadcast %10 : vector<1x256xf32> to vector<128x256xf32>
    %12 = arith.addf %9, %11 : vector<128x256xf32>
    %13 = vector.extract_strided_slice %12 {offsets = [0, 0], sizes = [128, 128], strides = [1, 1]} : vector<128x256xf32> to vector<128x128xf32>
    %cst_7 = arith.constant 0.000000e+00 : f32
    %14 = vector.broadcast %cst_7 : f32 to vector<128x128xf32>
    %15 = arith.maximumf %13, %14 : vector<128x128xf32>
    %16 = arith.truncf %15 : vector<128x128xf32> to vector<128x128xbf16>
    %17 = vector.extract_strided_slice %12 {offsets = [0, 128], sizes = [128, 128], strides = [1, 1]} : vector<128x256xf32> to vector<128x128xf32>
    %c0_8 = arith.constant 0 : index
    %c0_9 = arith.constant 0 : index
    %18 = vector.load %arg10[%c0_8, %c0_9] : memref<16x128xbf16, #tpu.memory_space<vmem>>, vector<16x128xbf16>
    %cst_10 = arith.constant dense<0.000000e+00> : vector<16x128xf32>
    %19 = tpu.matmul %18, %16, %cst_10 {dimension_numbers = #tpu.dot_dimension_numbers<[1], [1], [0], [0], [0, 0, 1, 0], [], []>} : vector<16x128xbf16>, vector<128x128xbf16>, vector<16x128xf32> -> vector<16x128xf32>
    %20 = tpu.bitcast %19 : vector<16x128xf32> -> vector<16x128xi32>
    %c0_i32_11 = arith.constant 0 : i32
    %21 = vector.broadcast %c0_i32_11 : i32 to vector<16x128xi32>
    %22 = arith.cmpi sge, %20, %21 : vector<16x128xi32>
    %c-2147483648_i32 = arith.constant -2147483648 : i32
    %23 = vector.broadcast %c-2147483648_i32 : i32 to vector<16x128xi32>
    %24 = arith.subi %23, %20 : vector<16x128xi32>
    %25 = arith.select %22, %20, %24 : vector<16x128xi1>, vector<16x128xi32>
    %c-2147483648_i32_12 = arith.constant -2147483648 : i32
    %26 = vector.broadcast %c-2147483648_i32_12 : i32 to vector<1x128xi32>
    %c2147483647_i32 = arith.constant 2147483647 : i32
    %27 = vector.broadcast %c2147483647_i32 : i32 to vector<1x128xi32>
    %c0_i32_13 = arith.constant 0 : i32
    %c32_i32 = arith.constant 32 : i32
    %28 = arith.addi %c0_i32_13, %c32_i32 : i32
    %c1_i32 = arith.constant 1 : i32
    %29:2 = scf.for %arg11 = %c0_i32_13 to %28 step %c1_i32 iter_args(%arg12 = %26, %arg13 = %27) -> (vector<1x128xi32>, vector<1x128xi32>)  : i32 {
      %90 = arith.andi %arg12, %arg13 : vector<1x128xi32>
      %91 = arith.xori %arg12, %arg13 : vector<1x128xi32>
      %c1_i32_29 = arith.constant 1 : i32
      %92 = vector.broadcast %c1_i32_29 : i32 to vector<1x128xi32>
      %93 = arith.shrsi %91, %92 : vector<1x128xi32>
      %94 = arith.addi %90, %93 : vector<1x128xi32>
      %95 = vector.broadcast %94 : vector<1x128xi32> to vector<16x128xi32>
      %96 = arith.cmpi sge, %25, %95 : vector<16x128xi32>
      %97 = arith.extui %96 : vector<16x128xi1> to vector<16x128xi32>
      %98 = arith.sitofp %97 : vector<16x128xi32> to vector<16x128xf32>
      %cst_30 = arith.constant dense<0.000000e+00> : vector<128xf32>
      %99 = vector.multi_reduction <add>, %98, %cst_30 [0] : vector<16x128xf32> to vector<128xf32>
      %100 = vector.shape_cast %99 : vector<128xf32> to vector<1x128xf32>
      %101 = vector.broadcast %2 : f32 to vector<1x128xf32>
      %102 = arith.cmpf oge, %100, %101 : vector<1x128xf32>
      %103 = arith.select %102, %94, %arg12 : vector<1x128xi1>, vector<1x128xi32>
      %104 = arith.select %102, %arg13, %94 : vector<1x128xi1>, vector<1x128xi32>
      scf.yield %103, %104 : vector<1x128xi32>, vector<1x128xi32>
    }
    %30 = vector.broadcast %29#0 : vector<1x128xi32> to vector<16x128xi32>
    %31 = arith.cmpi sgt, %25, %30 : vector<16x128xi32>
    %32 = vector.broadcast %29#0 : vector<1x128xi32> to vector<16x128xi32>
    %33 = arith.cmpi eq, %25, %32 : vector<16x128xi32>
    %34 = arith.extui %31 : vector<16x128xi1> to vector<16x128xi32>
    %35 = arith.sitofp %34 : vector<16x128xi32> to vector<16x128xf32>
    %cst_14 = arith.constant dense<0.000000e+00> : vector<128xf32>
    %36 = vector.multi_reduction <add>, %35, %cst_14 [0] : vector<16x128xf32> to vector<128xf32>
    %37 = vector.shape_cast %36 : vector<128xf32> to vector<1x128xf32>
    %38 = tpu.iota {dimensions = array<i32: 0>} : vector<16x16xi32>
    %39 = tpu.iota {dimensions = array<i32: 1>} : vector<16x16xi32>
    %40 = arith.cmpi slt, %39, %38 : vector<16x16xi32>
    %41 = arith.extui %40 : vector<16x16xi1> to vector<16x16xi32>
    %42 = arith.sitofp %41 : vector<16x16xi32> to vector<16x16xf32>
    %43 = arith.truncf %42 : vector<16x16xf32> to vector<16x16xbf16>
    %44 = arith.extui %33 : vector<16x128xi1> to vector<16x128xi32>
    %45 = arith.sitofp %44 : vector<16x128xi32> to vector<16x128xf32>
    %46 = arith.truncf %45 : vector<16x128xf32> to vector<16x128xbf16>
    %cst_15 = arith.constant dense<0.000000e+00> : vector<16x128xf32>
    %47 = tpu.matmul %43, %46, %cst_15 {dimension_numbers = #tpu.dot_dimension_numbers<[1], [0], [0], [1], [0, 0, 1, 1], [], []>} : vector<16x16xbf16>, vector<16x128xbf16>, vector<16x128xf32> -> vector<16x128xf32>
    %48 = vector.broadcast %37 : vector<1x128xf32> to vector<16x128xf32>
    %49 = arith.addf %48, %47 : vector<16x128xf32>
    %50 = vector.broadcast %2 : f32 to vector<16x128xf32>
    %51 = arith.cmpf olt, %49, %50 : vector<16x128xf32>
    %52 = arith.andi %33, %51 : vector<16x128xi1>
    %53 = arith.ori %31, %52 : vector<16x128xi1>
    %cst_16 = arith.constant 1.000000e+00 : f32
    %cst_17 = arith.constant 0.000000e+00 : f32
    %54 = vector.broadcast %cst_16 : f32 to vector<16x128xf32>
    %55 = vector.broadcast %cst_17 : f32 to vector<16x128xf32>
    %56 = arith.select %53, %54, %55 : vector<16x128xi1>, vector<16x128xf32>
    %57 = tpu.iota {dimensions = array<i32: 1>} : vector<1x128xi32>
    %c128_i32 = arith.constant 128 : i32
    %58 = arith.muli %arg1, %c128_i32 : i32
    %59 = vector.broadcast %58 : i32 to vector<1x128xi32>
    %60 = arith.addi %57, %59 : vector<1x128xi32>
    %c8_i32 = arith.constant 8 : i32
    %61 = vector.broadcast %c8_i32 : i32 to vector<1x128xi32>
    %62 = arith.cmpi slt, %60, %61 : vector<1x128xi32>
    %63 = arith.extui %62 : vector<1x128xi1> to vector<1x128xi32>
    %64 = arith.sitofp %63 : vector<1x128xi32> to vector<1x128xf32>
    %65 = vector.broadcast %64 : vector<1x128xf32> to vector<16x128xf32>
    %66 = arith.mulf %56, %65 : vector<16x128xf32>
    %cst_18 = arith.constant dense<0xFF800000> : vector<128xf32>
    %67 = vector.multi_reduction <maximumf>, %19, %cst_18 [0] : vector<16x128xf32> to vector<128xf32>
    %68 = vector.shape_cast %67 : vector<128xf32> to vector<1x128xf32>
    %69 = vector.broadcast %68 : vector<1x128xf32> to vector<16x128xf32>
    %70 = arith.subf %19, %69 : vector<16x128xf32>
    %71 = math.exp %70 : vector<16x128xf32>
    %cst_19 = arith.constant dense<0.000000e+00> : vector<128xf32>
    %72 = vector.multi_reduction <add>, %71, %cst_19 [0] : vector<16x128xf32> to vector<128xf32>
    %73 = vector.shape_cast %72 : vector<128xf32> to vector<1x128xf32>
    %74 = tpu.reciprocal %73 {approx = true} : vector<1x128xf32> -> vector<1x128xf32>
    %75 = vector.broadcast %74 : vector<1x128xf32> to vector<16x128xf32>
    %76 = arith.mulf %71, %75 : vector<16x128xf32>
    %77 = arith.mulf %76, %66 : vector<16x128xf32>
    %c0_20 = arith.constant 0 : index
    %c0_21 = arith.constant 0 : index
    %c0_22 = arith.constant 0 : index
    %78 = vector.load %arg9[%c0_20, %c0_21, %c0_22] : memref<1x16x128xf32, #tpu.memory_space<vmem>>, vector<1x16x128xf32>
    %79 = vector.shape_cast %78 : vector<1x16x128xf32> to vector<16x128xf32>
    %80 = arith.truncf %77 : vector<16x128xf32> to vector<16x128xbf16>
    %81 = arith.truncf %17 : vector<128x128xf32> to vector<128x128xbf16>
    %cst_23 = arith.constant dense<0.000000e+00> : vector<16x128xf32>
    %82 = tpu.matmul %80, %81, %cst_23 {dimension_numbers = #tpu.dot_dimension_numbers<[1], [0], [0], [1], [0, 0, 1, 1], [], []>} : vector<16x128xbf16>, vector<128x128xbf16>, vector<16x128xf32> -> vector<16x128xf32>
    %83 = arith.addf %79, %82 : vector<16x128xf32>
    %c0_24 = arith.constant 0 : index
    %c0_25 = arith.constant 0 : index
    %c0_26 = arith.constant 0 : index
    %84 = vector.load %arg9[%c0_24, %c0_25, %c0_26] : memref<1x16x128xf32, #tpu.memory_space<vmem>>, vector<1x16x128xf32>
    %85 = vector.shape_cast %84 : vector<1x16x128xf32> to vector<16x128xf32>
    %86 = vector.shape_cast %83 : vector<16x128xf32> to vector<1x16x128xf32>
    tpu.vector_store %arg9[%c0_24, %c0_25, %c0_26], %86 {strides = array<i32>} : memref<1x16x128xf32, #tpu.memory_space<vmem>>, vector<1x16x128xf32>,
    %c0_i32_27 = arith.constant 0 : i32
    %87 = arith.cmpi eq, %arg1, %c0_i32_27 : i32
    %88 = arith.extui %87 : i1 to i32
    %c0_i32_28 = arith.constant 0 : i32
    %89 = arith.cmpi ne, %88, %c0_i32_28 : i32
    scf.if %89 {
      %c0_29 = arith.constant 0 : index
      %c0_30 = arith.constant 0 : index
      %c0_31 = arith.constant 0 : index
      %90 = vector.load %arg9[%c0_29, %c0_30, %c0_31] : memref<1x16x128xf32, #tpu.memory_space<vmem>>, vector<1x16x128xf32>
      %91 = vector.shape_cast %90 : vector<1x16x128xf32> to vector<16x128xf32>
      %c0_32 = arith.constant 0 : index
      %c0_33 = arith.constant 0 : index
      %92 = vector.load %arg7[%c0_32, %c0_33] : memref<1x128xf32, #tpu.memory_space<vmem>>, vector<1x128xf32>
      %93 = vector.broadcast %92 : vector<1x128xf32> to vector<16x128xf32>
      %94 = arith.mulf %91, %93 : vector<16x128xf32>
      %c0_34 = arith.constant 0 : index
      %c0_35 = arith.constant 0 : index
      %95 = vector.load %arg8[%c0_34, %c0_35] : memref<1x128xf32, #tpu.memory_space<vmem>>, vector<1x128xf32>
      %96 = vector.broadcast %95 : vector<1x128xf32> to vector<16x128xf32>
      %97 = arith.addf %94, %96 : vector<16x128xf32>
      %cst_36 = arith.constant 0.000000e+00 : f32
      %98 = vector.broadcast %cst_36 : f32 to vector<16x128xf32>
      %99 = arith.maximumf %97, %98 : vector<16x128xf32>
      %c0_37 = arith.constant 0 : index
      %c0_38 = arith.constant 0 : index
      %c0_39 = arith.constant 0 : index
      %100 = vector.load %arg3[%c0_37, %c0_38, %c0_39] : memref<1x16x128xf32, #tpu.memory_space<vmem>>, vector<1x16x128xf32>
      %101 = vector.shape_cast %100 : vector<1x16x128xf32> to vector<16x128xf32>
      %102 = arith.addf %99, %101 : vector<16x128xf32>
      %c0_40 = arith.constant 0 : index
      %c0_41 = arith.constant 0 : index
      %c0_42 = arith.constant 0 : index
      %103 = vector.load %arg9[%c0_40, %c0_41, %c0_42] : memref<1x16x128xf32, #tpu.memory_space<vmem>>, vector<1x16x128xf32>
      %104 = vector.shape_cast %103 : vector<1x16x128xf32> to vector<16x128xf32>
      %105 = vector.shape_cast %102 : vector<16x128xf32> to vector<1x16x128xf32>
      tpu.vector_store %arg9[%c0_40, %c0_41, %c0_42], %105 {strides = array<i32>} : memref<1x16x128xf32, #tpu.memory_space<vmem>>, vector<1x16x128xf32>,
    } else {
    }
    return
  }
  func.func @transform_0(%arg0: i32, %arg1: i32, %arg2: memref<2xi32, #tpu.memory_space<smem>>) -> (i32, i32, i32) {
    %c0_i32 = arith.constant 0 : i32
    %c0_i32_0 = arith.constant 0 : i32
    %c0_i32_1 = arith.constant 0 : i32
    return %arg0, %c0_i32, %c0_i32_0 : i32, i32, i32
  }
  func.func @transform_1(%arg0: i32, %arg1: i32, %arg2: memref<2xi32, #tpu.memory_space<smem>>) -> (i32, i32, i32) {
    %c0_i32 = arith.constant 0 : i32
    %c0_i32_0 = arith.constant 0 : i32
    return %arg0, %arg1, %c0_i32 : i32, i32, i32
  }
  func.func @transform_2(%arg0: i32, %arg1: i32, %arg2: memref<2xi32, #tpu.memory_space<smem>>) -> (i32, i32) {
    %c0_i32 = arith.constant 0 : i32
    %c0_i32_0 = arith.constant 0 : i32
    %c0_i32_1 = arith.constant 0 : i32
    return %c0_i32, %c0_i32_0 : i32, i32
  }
  func.func @transform_3(%arg0: i32, %arg1: i32, %arg2: memref<2xi32, #tpu.memory_space<smem>>) -> (i32, i32) {
    %c0_i32 = arith.constant 0 : i32
    %c0_i32_0 = arith.constant 0 : i32
    %c0_i32_1 = arith.constant 0 : i32
    return %c0_i32, %c0_i32_0 : i32, i32
  }
  func.func @transform_4(%arg0: i32, %arg1: i32, %arg2: memref<2xi32, #tpu.memory_space<smem>>) -> (i32, i32) {
    %c0_i32 = arith.constant 0 : i32
    %c0_i32_0 = arith.constant 0 : i32
    %c0_i32_1 = arith.constant 0 : i32
    return %c0_i32, %c0_i32_0 : i32, i32
  }
  func.func @transform_5(%arg0: i32, %arg1: i32, %arg2: memref<2xi32, #tpu.memory_space<smem>>) -> (i32, i32) {
    %c0_i32 = arith.constant 0 : i32
    %c0_i32_0 = arith.constant 0 : i32
    %c0_i32_1 = arith.constant 0 : i32
    return %c0_i32, %c0_i32_0 : i32, i32
  }
  func.func @transform_6(%arg0: i32, %arg1: i32, %arg2: memref<2xi32, #tpu.memory_space<smem>>) -> (i32, i32, i32) {
    %c0_i32 = arith.constant 0 : i32
    %c0_i32_0 = arith.constant 0 : i32
    %c0_i32_1 = arith.constant 0 : i32
    return %arg0, %c0_i32, %c0_i32_0 : i32, i32, i32
  }
}

</mosaic_0001>

<llo_original>
// kernel: tpu_custom_call.1
$region0: #{tpu_custom_call.1}
  #allocation0 [shape = 'u32[]', space=smem, size = 0x4, offset = 0x4, fixed_abs, tag = 'smem constant byte address 0x4 - core index']
  #allocation1 [shape = 'u32[72,128]{1,0:T(1,128)}', space=vmem, size = 0x9000, scoped, tag = 'internal scratch']
  #allocation2 [shape = 'bf16[16,128]{1,0:T(8,128)(2,1)}', space=vmem, size = 0x1000, scoped, tag = 'scratch operand']
  #allocation3 [shape = 's32[1]{0}', space=sflag, size = 0x4, scoped, tag = 'scoped memory for tpu_custom_call.1']
  #allocation4 [shape = 'u8[512]{0}', space=smem, size = 0x200, scoped, tag = 'prefetched SMEM operand 0']
  %s0 = inlined_call_operand.hbm [shape: s32[2], index: 0, kind: input, shape index: {}]
  %s1 = inlined_call_operand.hbm [shape: f32[2,16,128], index: 1, kind: input, shape index: {}]
  %s2 = inlined_call_operand.hbm [shape: bf16[2,128,128], index: 2, kind: input, shape index: {}]
  %s3 = inlined_call_operand.hbm [shape: bf16[128,256], index: 3, kind: input, shape index: {}]
  %s4 = inlined_call_operand.vmem [shape: f32[1,256], index: 4, kind: input, shape index: {}]
  %s5 = inlined_call_operand.vmem [shape: f32[1,128], index: 5, kind: input, shape index: {}]
  %s6 = inlined_call_operand.vmem [shape: f32[1,128], index: 6, kind: input, shape index: {}]
  %s7 = inlined_call_operand.hbm [shape: f32[2,16,128], index: 7, kind: output, shape index: {}]
  %s8 = sld [smem:[#allocation0]]
  $region84: #{tpu_custom_call.1} parent=0
    _
  %s10 = ssub.s32 1, %s8
  %s11 = scalar_select 0, %s10, %s8
  %s13 = sshll.u32 %s0, 4
  %s14 = int_to_ptr.hbm [resolvable:$true] %s13
  %16 = dma.hbm_to_smem %s14, 16, [#allocation4], [#allocation3]
  %18 = dma.done [#allocation3], 16
  %19 = sfence
  $region1: #{tpu_custom_call.1} parent=0
    #allocation5 [shape = 'u8[16384]{0}', space=vmem, size = 0x4000, scoped, tag = 'input window, operand 1']
    #allocation6 [shape = 's32[2]{0}', space=sflag, size = 0x8, scoped, tag = 'scoped memory for tpu_custom_call.1']
    #allocation7 [shape = 's32[2]{0}', space=sflag, size = 0x8, scoped, tag = 'scoped memory for tpu_custom_call.1']
    #allocation8 [shape = 'u8[65536]{0}', space=vmem, size = 0x10000, scoped, tag = 'input window, operand 2']
    #allocation9 [shape = 's32[2]{0}', space=sflag, size = 0x8, scoped, tag = 'scoped memory for tpu_custom_call.1']
    #allocation10 [shape = 'u8[65536]{0}', space=vmem, size = 0x10000, scoped, tag = 'input window, operand 3, single buffered']
    #allocation11 [shape = 'u8[16384]{0}', space=vmem, size = 0x4000, scoped, tag = 'output window, operand 0']
    %20 = vsyncpa [#allocation6], 0
    %s21 = scalar_lea.sflag [#allocation6], 1
    %22 = vsyncpa %s21, 0
    %23 = vsyncpa [#allocation9], 0
    %s24 = scalar_lea.sflag [#allocation9], 1
    %25 = vsyncpa %s24, 0
    %26 = vsyncpa [#allocation7], 0
    %s27 = scalar_lea.sflag [#allocation7], 1
    %28 = vsyncpa %s27, 0
    loop: start=0, step=1, limit=4
    $region2: #{tpu_custom_call.1} parent=1 // loop_pre_header
      _
    $region3: #{tpu_custom_call.1} parent=1 // loop_header
      %s30 = sphi 0, %s34
      %p31 = scmp.ge.s32.totalorder %s30, 4
      %s37 = sphi 0, %s49
      %s38 = sphi 0, %s45
      %s39 = sphi 0, %s37
      %s40 = sphi 0, %s38
      %s41 = sphi 0, %s39
      %s42 = sphi 0, %s40
      %s52 = sphi 0, %s54
      %s55 = sphi 0, %s52
      %s56 = sphi 0, %s55
      %s72 = sphi 0, %s56
      %s80 = sphi 0, %s82
      %s83 = sphi 0, %s80
      %s84 = sphi 0, %s83
      %s100 = sphi 0, %s84
      %s104 = sphi 0, %s104
      %s106 = sphi 0, %s104
      %s107 = sphi 0, %s106
      %s121 = sphi 0, %s107
      %s125 = sphi 0, %s125
      %s127 = sphi 0, %s125
      %s128 = sphi 0, %s127
      %s142 = sphi 0, %s128
      %s146 = sphi 0, %s146
      %s148 = sphi 0, %s146
      %s149 = sphi 0, %s148
      %s163 = sphi 0, %s149
      %s167 = sphi 0, %s167
      %s169 = sphi 0, %s167
      %s170 = sphi 0, %s169
      %s184 = sphi 0, %s170
      %s190 = sphi 0, %s192
      %s193 = sphi 0, %s190
      %s194 = sphi 0, %s193
      %s210 = sphi 0, %s194
    $region4: #{tpu_custom_call.1} parent=1 // loop_header_branch
      %33 = sbr.rel (%p31) target = $region8
    $region5: #{tpu_custom_call.1} parent=1 // loop_body
      %s35 = ssub.s32 %s30, 1
      %s36 = ssub.s32 %s30, 2
      %s43 = sadd.s32 1, %s38
      %p44 = scmp.ge.s32.totalorder %s43, 1
      %s45 = scalar_select %p44, 0, %s43
      %s46 = sadd.s32 1, %s37
      %s47 = scalar_select %p44, %s46, %s37
      %p48 = scmp.ge.s32.totalorder %s47, 2
      %s49 = scalar_select %p48, 0, %s47
      %s50 = ssub.s32 %s37, %s49
      %p51 = scmp.eq.s32.totalorder %s50, 0
      %s53 = sadd.s32 %s52, 1
      %s54 = scalar_select %p51, %s52, %s53
      %p57 = pneg %p51
      %p58 = scmp.eq.s32.totalorder %s30, 1
      %p59 = por %p57, %p58
      %p60 = scmp.ne.s32.totalorder %s52, %s55
      %p61 = scmp.eq.s32.totalorder %s30, 0
      %p62 = por %p60, %p61
      %p63 = scmp.ne.s32.totalorder %s52, %s55
      %p64 = scmp.eq.s32.totalorder %s35, 1
      %p65 = por %p63, %p64
      %p66 = scmp.ne.s32.totalorder %s55, %s56
      %p67 = scmp.eq.s32.totalorder %s35, 0
      %p68 = por %p66, %p67
      %p69 = scmp.ne.s32.totalorder %s55, %s56
      %p70 = scmp.eq.s32.totalorder %s36, 1
      %p71 = por %p69, %p70
      %p73 = scmp.ne.s32.totalorder %s56, %s72
      %p74 = scmp.eq.s32.totalorder %s36, 0
      %p75 = por %p73, %p74
      %s76 = ssub.s32 %s37, %s49
      %s77 = ssub.s32 %s38, %s45
      %s78 = sor.u32 %s76, %s77
      %p79 = scmp.eq.s32.totalorder %s78, 0
      %s81 = sadd.s32 %s80, 1
      %s82 = scalar_select %p79, %s80, %s81
      %p85 = pneg %p79
      %p86 = scmp.eq.s32.totalorder %s30, 1
      %p87 = por %p85, %p86
      %p88 = scmp.ne.s32.totalorder %s80, %s83
      %p89 = scmp.eq.s32.totalorder %s30, 0
      %p90 = por %p88, %p89
      %p91 = scmp.ne.s32.totalorder %s80, %s83
      %p92 = scmp.eq.s32.totalorder %s35, 1
      %p93 = por %p91, %p92
      %p94 = scmp.ne.s32.totalorder %s83, %s84
      %p95 = scmp.eq.s32.totalorder %s35, 0
      %p96 = por %p94, %p95
      %p97 = scmp.ne.s32.totalorder %s83, %s84
      %p98 = scmp.eq.s32.totalorder %s36, 1
      %p99 = por %p97, %p98
      %p101 = scmp.ne.s32.totalorder %s84, %s100
      %p102 = scmp.eq.s32.totalorder %s36, 0
      %p103 = por %p101, %p102
      %s105 = sadd.s32 %s104, 1
      %p108 = scmp.eq.s32.totalorder %s30, 1
      %p109 = scmp.ne.s32.totalorder %s104, %s106
      %p110 = scmp.eq.s32.totalorder %s30, 0
      %p111 = por %p109, %p110
      %p112 = scmp.ne.s32.totalorder %s104, %s106
      %p113 = scmp.eq.s32.totalorder %s35, 1
      %p114 = por %p112, %p113
      %p115 = scmp.ne.s32.totalorder %s106, %s107
      %p116 = scmp.eq.s32.totalorder %s35, 0
      %p117 = por %p115, %p116
      %p118 = scmp.ne.s32.totalorder %s106, %s107
      %p119 = scmp.eq.s32.totalorder %s36, 1
      %p120 = por %p118, %p119
      %p122 = scmp.ne.s32.totalorder %s107, %s121
      %p123 = scmp.eq.s32.totalorder %s36, 0
      %p124 = por %p122, %p123
      %s126 = sadd.s32 %s125, 1
      %p129 = scmp.eq.s32.totalorder %s30, 1
      %p130 = scmp.ne.s32.totalorder %s125, %s127
      %p131 = scmp.eq.s32.totalorder %s30, 0
      %p132 = por %p130, %p131
      %p133 = scmp.ne.s32.totalorder %s125, %s127
      %p134 = scmp.eq.s32.totalorder %s35, 1
      %p135 = por %p133, %p134
      %p136 = scmp.ne.s32.totalorder %s127, %s128
      %p137 = scmp.eq.s32.totalorder %s35, 0
      %p138 = por %p136, %p137
      %p139 = scmp.ne.s32.totalorder %s127, %s128
      %p140 = scmp.eq.s32.totalorder %s36, 1
      %p141 = por %p139, %p140
      %p143 = scmp.ne.s32.totalorder %s128, %s142
      %p144 = scmp.eq.s32.totalorder %s36, 0
      %p145 = por %p143, %p144
      %s147 = sadd.s32 %s146, 1
      %p150 = scmp.eq.s32.totalorder %s30, 1
      %p151 = scmp.ne.s32.totalorder %s146, %s148
      %p152 = scmp.eq.s32.totalorder %s30, 0
      %p153 = por %p151, %p152
      %p154 = scmp.ne.s32.totalorder %s146, %s148
      %p155 = scmp.eq.s32.totalorder %s35, 1
      %p156 = por %p154, %p155
      %p157 = scmp.ne.s32.totalorder %s148, %s149
      %p158 = scmp.eq.s32.totalorder %s35, 0
      %p159 = por %p157, %p158
      %p160 = scmp.ne.s32.totalorder %s148, %s149
      %p161 = scmp.eq.s32.totalorder %s36, 1
      %p162 = por %p160, %p161
      %p164 = scmp.ne.s32.totalorder %s149, %s163
      %p165 = scmp.eq.s32.totalorder %s36, 0
      %p166 = por %p164, %p165
      %s168 = sadd.s32 %s167, 1
      %p171 = scmp.eq.s32.totalorder %s30, 1
      %p172 = scmp.ne.s32.totalorder %s167, %s169
      %p173 = scmp.eq.s32.totalorder %s30, 0
      %p174 = por %p172, %p173
      %p175 = scmp.ne.s32.totalorder %s167, %s169
      %p176 = scmp.eq.s32.totalorder %s35, 1
      %p177 = por %p175, %p176
      %p178 = scmp.ne.s32.totalorder %s169, %s170
      %p179 = scmp.eq.s32.totalorder %s35, 0
      %p180 = por %p178, %p179
      %p181 = scmp.ne.s32.totalorder %s169, %s170
      %p182 = scmp.eq.s32.totalorder %s36, 1
      %p183 = por %p181, %p182
      %p185 = scmp.ne.s32.totalorder %s170, %s184
      %p186 = scmp.eq.s32.totalorder %s36, 0
      %p187 = por %p185, %p186
      %s188 = ssub.s32 %s37, %s49
      %p189 = scmp.eq.s32.totalorder %s188, 0
      %s191 = sadd.s32 %s190, 1
      %s192 = scalar_select %p189, %s190, %s191
      %p195 = pneg %p189
      %p196 = scmp.eq.s32.totalorder %s30, 1
      %p197 = por %p195, %p196
      %p198 = scmp.ne.s32.totalorder %s190, %s193
      %p199 = scmp.eq.s32.totalorder %s30, 0
      %p200 = por %p198, %p199
      %p201 = scmp.ne.s32.totalorder %s190, %s193
      %p202 = scmp.eq.s32.totalorder %s35, 1
      %p203 = por %p201, %p202
      %p204 = scmp.ne.s32.totalorder %s193, %s194
      %p205 = scmp.eq.s32.totalorder %s35, 0
      %p206 = por %p204, %p205
      %p207 = scmp.ne.s32.totalorder %s193, %s194
      %p208 = scmp.eq.s32.totalorder %s36, 1
      %p209 = por %p207, %p208
      %p211 = scmp.ne.s32.totalorder %s194, %s210
      %p212 = scmp.eq.s32.totalorder %s36, 0
      %p213 = por %p211, %p212
      %p214 = scmp.le.s32.totalorder 1, %s30
      %p215 = scmp.lt.s32.totalorder %s30, 3
      %p216 = pnand %p214, %p215
      %p217 = pneg %p216
      // Predicated region
      $region9: #{tpu_custom_call.1} parent=5 // pred_check
        _
      $region10: #{tpu_custom_call.1} parent=5 // pred_check_branch
        %219 = sbr.rel (%p216) target = $region12
      $region11: #{tpu_custom_call.1} parent=5 // pred_region
        %s220 = ssub.s32 %s30, 1
        // Predicated region
        $region13: #{tpu_custom_call.1} parent=11 // pred_check
          %p221 = pneg %p117
        $region14: #{tpu_custom_call.1} parent=11 // pred_check_branch
          %223 = sbr.rel (%p221) target = $region16
        $region15: #{tpu_custom_call.1} parent=11 // pred_region
          %225 = vsyncadd [#allocation9], 0
          %s226 = sshll.u32 %s3, 4
          %s227 = int_to_ptr.hbm [resolvable:$true] %s226
          %s228 = sshll.u32 [#allocation10], 4
          %s229 = int_to_ptr.vmem [resolvable:$true] %s228
          %234 = dma.hbm_to_vmem [thread:$0]  %s227, 2048, %s229, [#allocation9], 128, 128, 8
        $region16: #{tpu_custom_call.1} parent=11 // pred_fallthru
          _
        // Predicated region
        $region17: #{tpu_custom_call.1} parent=11 // pred_check
          %p235 = pneg %p138
        $region18: #{tpu_custom_call.1} parent=11 // pred_check_branch
          %237 = sbr.rel (%p235) target = $region20
        $region19: #{tpu_custom_call.1} parent=11 // pred_region
          _
        $region20: #{tpu_custom_call.1} parent=11 // pred_fallthru
          _
        // Predicated region
        $region21: #{tpu_custom_call.1} parent=11 // pred_check
          %p238 = pneg %p159
        $region22: #{tpu_custom_call.1} parent=11 // pred_check_branch
          %240 = sbr.rel (%p238) target = $region24
        $region23: #{tpu_custom_call.1} parent=11 // pred_region
          _
        $region24: #{tpu_custom_call.1} parent=11 // pred_fallthru
          _
        // Predicated region
        $region25: #{tpu_custom_call.1} parent=11 // pred_check
          %p241 = pneg %p180
        $region26: #{tpu_custom_call.1} parent=11 // pred_check_branch
          %243 = sbr.rel (%p241) target = $region28
        $region27: #{tpu_custom_call.1} parent=11 // pred_region
          _
        $region28: #{tpu_custom_call.1} parent=11 // pred_fallthru
          _
      $region12: #{tpu_custom_call.1} parent=5 // pred_fallthru
        _
      %p244 = scmp.lt.s32.totalorder %s30, 2
      // Predicated region
      $region29: #{tpu_custom_call.1} parent=5 // pred_check
        %p245 = pneg %p244
      $region30: #{tpu_custom_call.1} parent=5 // pred_check_branch
        %247 = sbr.rel (%p245) target = $region32
      $region31: #{tpu_custom_call.1} parent=5 // pred_region
        // Predicated region
        $region33: #{tpu_custom_call.1} parent=31 // pred_check
          %p248 = pneg %p62
        $region34: #{tpu_custom_call.1} parent=31 // pred_check_branch
          %250 = sbr.rel (%p248) target = $region36
        $region35: #{tpu_custom_call.1} parent=31 // pred_region
          %s251 = sand.u32 %s52, 1
          %s252 = scalar_lea.sflag [#allocation6], %s251
          %s253 = sand.u32 %s52, 1
          %s254 = smul.addr %s253, 16
          %s255 = scalar_lea.vmem [#allocation5], %s254
          %257 = vsyncadd %s252, 0
          %s258 = smul.addr %s37, 2
          %s259 = smul.addr %s258, 8
          %s260 = scalar_lea.hbm %s1, %s259
          %s261 = sshll.u32 %s260, 4
          %s262 = int_to_ptr.hbm [resolvable:$true] %s261
          %s263 = sshll.u32 %s255, 4
          %s264 = int_to_ptr.vmem [resolvable:$true] %s263
          %269 = dma.hbm_to_vmem [thread:$0]  %s262, 256, %s264, %s252, 128, 128, 8
        $region36: #{tpu_custom_call.1} parent=31 // pred_fallthru
          _
        // Predicated region
        $region37: #{tpu_custom_call.1} parent=31 // pred_check
          %p270 = pneg %p90
        $region38: #{tpu_custom_call.1} parent=31 // pred_check_branch
          %272 = sbr.rel (%p270) target = $region40
        $region39: #{tpu_custom_call.1} parent=31 // pred_region
          %s273 = sand.u32 %s30, 1
          %s274 = scalar_lea.sflag [#allocation9], %s273
          %s275 = sand.u32 %s80, 1
          %s276 = smul.addr %s275, 64
          %s277 = scalar_lea.vmem [#allocation8], %s276
          %s278 = smul.u32 16, %s38
          %280 = vsyncadd %s274, 0
          %s281 = smul.addr %s37, 16
          %s282 = sadd.s32 %s278, %s281
          %s283 = smul.addr %s282, 4
          %s284 = scalar_lea.hbm %s2, %s283
          %s285 = sshll.u32 %s284, 4
          %s286 = int_to_ptr.hbm [resolvable:$true] %s285
          %s287 = sshll.u32 %s277, 4
          %s288 = int_to_ptr.vmem [resolvable:$true] %s287
          %293 = dma.hbm_to_vmem [thread:$0]  %s286, 1024, %s288, %s274, 64, 64, 4
        $region40: #{tpu_custom_call.1} parent=31 // pred_fallthru
          _
      $region32: #{tpu_custom_call.1} parent=5 // pred_fallthru
        _
      %p294 = scmp.le.s32.totalorder 1, %s30
      %p295 = scmp.lt.s32.totalorder %s30, 3
      %p296 = pnand %p294, %p295
      %p297 = pneg %p296
      // Predicated region
      $region41: #{tpu_custom_call.1} parent=5 // pred_check
        _
      $region42: #{tpu_custom_call.1} parent=5 // pred_check_branch
        %299 = sbr.rel (%p296) target = $region44
      $region43: #{tpu_custom_call.1} parent=5 // pred_region
        %s300 = ssub.s32 %s30, 1
        %s301 = sand.u32 %s55, 1
        %s302 = scalar_lea.sflag [#allocation6], %s301
        %s303 = sand.u32 %s55, 1
        %s304 = smul.addr %s303, 16
        %s305 = scalar_lea.vmem [#allocation5], %s304
        // Predicated region
        $region45: #{tpu_custom_call.1} parent=43 // pred_check
          %p306 = pneg %p68
        $region46: #{tpu_custom_call.1} parent=43 // pred_check_branch
          %308 = sbr.rel (%p306) target = $region48
        $region47: #{tpu_custom_call.1} parent=43 // pred_region
          %310 = dma.done %s302, 256
        $region48: #{tpu_custom_call.1} parent=43 // pred_fallthru
          _
        %s311 = sand.u32 %s35, 1
        %s312 = scalar_lea.sflag [#allocation9], %s311
        %s313 = sand.u32 %s83, 1
        %s314 = smul.addr %s313, 64
        %s315 = scalar_lea.vmem [#allocation8], %s314
        // Predicated region
        $region49: #{tpu_custom_call.1} parent=43 // pred_check
          %p316 = pneg %p96
        $region50: #{tpu_custom_call.1} parent=43 // pred_check_branch
          %318 = sbr.rel (%p316) target = $region52
        $region51: #{tpu_custom_call.1} parent=43 // pred_region
          %320 = dma.done %s312, 1024
        $region52: #{tpu_custom_call.1} parent=43 // pred_fallthru
          _
        // Predicated region
        $region53: #{tpu_custom_call.1} parent=43 // pred_check
          %p321 = pneg %p117
        $region54: #{tpu_custom_call.1} parent=43 // pred_check_branch
          %323 = sbr.rel (%p321) target = $region56
        $region55: #{tpu_custom_call.1} parent=43 // pred_region
          %325 = dma.done [#allocation9], 2048
        $region56: #{tpu_custom_call.1} parent=43 // pred_fallthru
          _
        %s326 = sand.u32 %s55, 1
        %s327 = scalar_lea.sflag [#allocation6], %s326
        %s328 = sand.u32 %s55, 1
        %s329 = smul.addr %s328, 16
        %s330 = scalar_lea.vmem [#allocation5], %s329
        %p331 = pneg %p68
        %p332 = pneg %p65
        %s333 = sand.u32 %s35, 1
        %s334 = scalar_lea.sflag [#allocation9], %s333
        %s335 = sand.u32 %s83, 1
        %s336 = smul.addr %s335, 64
        %s337 = scalar_lea.vmem [#allocation8], %s336
        %p338 = pneg %p96
        %p339 = pneg %p93
        %p340 = pneg %p117
        %p341 = pneg %p114
        %p342 = pneg %p138
        %p343 = pneg %p135
        %p344 = pneg %p159
        %p345 = pneg %p156
        %p346 = pneg %p180
        %p347 = pneg %p177
        %p348 = pneg %p206
        %p349 = pneg %p203
        %s350 = sand.u32 %s193, 1
        %s351 = scalar_lea.sflag [#allocation7], %s350
        %s352 = sand.u32 %s193, 1
        %s353 = smul.addr %s352, 16
        %s354 = scalar_lea.vmem [#allocation11], %s353
        %s355 = smul.u32 16, %s40
        %s357 = sld [smem:[#allocation4 + %s39]]
        %s358 = scvt.s32.f32 %s357
        %p359 = scmp.eq.s32.totalorder %s40, 0
        // Predicated region
        $region57: #{tpu_custom_call.1} parent=43 // pred_check
          %p360 = pneg %p359
        $region58: #{tpu_custom_call.1} parent=43 // pred_check_branch
          %362 = sbr.rel (%p360) target = $region60
        $region59: #{tpu_custom_call.1} parent=43 // pred_region
          %363 = vst [vmem:[%s354] sm:$0xff] 0.0
          %364 = vst [vmem:[%s354 + $0x8] sm:$0xff] 0.0
          %v365 = vld [vmem:[%s305] sm:$0xff]
          %v366 = vld [vmem:[%s305 + $0x8] sm:$0xff]
          %v367 = vpack.c.bf16 %v365, %v365
          %v368 = vpack.c.bf16 %v366, %v366
          %369 = vst [vmem:[#allocation2] sm:$0xf] %v367
          %370 = vst [vmem:[#allocation2 + $0x4] sm:$0xf] %v368
        $region60: #{tpu_custom_call.1} parent=43 // pred_fallthru
          _
        %v371 = vld [vmem:[%s315] sm:$0xf]
        %v372 = vld [vmem:[%s315 + $0x4] sm:$0xf]
        %v373 = vld [vmem:[%s315 + $0x8] sm:$0xf]
        %v374 = vld [vmem:[%s315 + $0xc] sm:$0xf]
        %v375 = vld [vmem:[%s315 + $0x10] sm:$0xf]
        %v376 = vld [vmem:[%s315 + $0x14] sm:$0xf]
        %v377 = vld [vmem:[%s315 + $0x18] sm:$0xf]
        %v378 = vld [vmem:[%s315 + $0x1c] sm:$0xf]
        %v379 = vld [vmem:[%s315 + $0x20] sm:$0xf]
        %v380 = vld [vmem:[%s315 + $0x24] sm:$0xf]
        %v381 = vld [vmem:[%s315 + $0x28] sm:$0xf]
        %v382 = vld [vmem:[%s315 + $0x2c] sm:$0xf]
        %v383 = vld [vmem:[%s315 + $0x30] sm:$0xf]
        %v384 = vld [vmem:[%s315 + $0x34] sm:$0xf]
        %v385 = vld [vmem:[%s315 + $0x38] sm:$0xf]
        %v386 = vld [vmem:[%s315 + $0x3c] sm:$0xf]
        %v387 = vld [vmem:[#allocation10] sm:$0xff]
        %v388 = vld [vmem:[#allocation10 + $0x8] sm:$0xff]
        %v389 = vld [vmem:[#allocation10 + $0x10] sm:$0xff]
        %v390 = vld [vmem:[#allocation10 + $0x18] sm:$0xff]
        %v391 = vld [vmem:[#allocation10 + $0x20] sm:$0xff]
        %v392 = vld [vmem:[#allocation10 + $0x28] sm:$0xff]
        %v393 = vld [vmem:[#allocation10 + $0x30] sm:$0xff]
        %v394 = vld [vmem:[#allocation10 + $0x38] sm:$0xff]
        %v395 = vld [vmem:[#allocation10 + $0x40] sm:$0xff]
        %v396 = vld [vmem:[#allocation10 + $0x48] sm:$0xff]
        %v397 = vld [vmem:[#allocation10 + $0x50] sm:$0xff]
        %v398 = vld [vmem:[#allocation10 + $0x58] sm:$0xff]
        %v399 = vld [vmem:[#allocation10 + $0x60] sm:$0xff]
        %v400 = vld [vmem:[#allocation10 + $0x68] sm:$0xff]
        %v401 = vld [vmem:[#allocation10 + $0x70] sm:$0xff]
        %v402 = vld [vmem:[#allocation10 + $0x78] sm:$0xff]
        %v403 = vld [vmem:[%s4] sm:$0x3]
        %v405 = vperm.slane %v403, 0
        %v406 = vperm.slane %v403, 1
        %v425 = vunpack.c.l.b16 %v371
        %v426 = vunpack.c.l.b16 %v372
        %v427 = vunpack.c.l.b16 %v373
        %v428 = vunpack.c.l.b16 %v374
        %v429 = vunpack.c.l.b16 %v375
        %v430 = vunpack.c.l.b16 %v376
        %v431 = vunpack.c.l.b16 %v377
        %v432 = vunpack.c.l.b16 %v378
        %v433 = vunpack.c.l.b16 %v379
        %v434 = vunpack.c.l.b16 %v380
        %v435 = vunpack.c.l.b16 %v381
        %v436 = vunpack.c.l.b16 %v382
        %v437 = vunpack.c.l.b16 %v383
        %v438 = vunpack.c.l.b16 %v384
        %v439 = vunpack.c.l.b16 %v385
        %v440 = vunpack.c.l.b16 %v386
        %v441 = vpack.c.b16 %v426, %v425
        %v442 = vpack.c.b16 %v428, %v427
        %v443 = vpack.c.b16 %v430, %v429
        %v444 = vpack.c.b16 %v432, %v431
        %v445 = vpack.c.b16 %v434, %v433
        %v446 = vpack.c.b16 %v436, %v435
        %v447 = vpack.c.b16 %v438, %v437
        %v448 = vpack.c.b16 %v440, %v439
        %v473 = vunpack.c.l.b16 %v387
        %v474 = vunpack.c.h.b16 %v387
        %v475 = vunpack.c.l.b16 %v388
        %v476 = vunpack.c.h.b16 %v388
        %v477 = vunpack.c.l.b16 %v389
        %v478 = vunpack.c.h.b16 %v389
        %v479 = vunpack.c.l.b16 %v390
        %v480 = vunpack.c.h.b16 %v390
        %v481 = vunpack.c.l.b16 %v391
        %v482 = vunpack.c.h.b16 %v391
        %v483 = vunpack.c.l.b16 %v392
        %v484 = vunpack.c.h.b16 %v392
        %v485 = vunpack.c.l.b16 %v393
        %v486 = vunpack.c.h.b16 %v393
        %v487 = vunpack.c.l.b16 %v394
        %v488 = vunpack.c.h.b16 %v394
        %v489 = vunpack.c.l.b16 %v395
        %v490 = vunpack.c.h.b16 %v395
        %v491 = vunpack.c.l.b16 %v396
        %v492 = vunpack.c.h.b16 %v396
        %v493 = vunpack.c.l.b16 %v397
        %v494 = vunpack.c.h.b16 %v397
        %v495 = vunpack.c.l.b16 %v398
        %v496 = vunpack.c.h.b16 %v398
        %v497 = vunpack.c.l.b16 %v399
        %v498 = vunpack.c.h.b16 %v399
        %v499 = vunpack.c.l.b16 %v400
        %v500 = vunpack.c.h.b16 %v400
        %v501 = vunpack.c.l.b16 %v401
        %v502 = vunpack.c.h.b16 %v401
        %v503 = vunpack.c.l.b16 %v402
        %v504 = vunpack.c.h.b16 %v402
        %v505 = vpack.c.b16 %v475, %v473
        %v506 = vpack.c.b16 %v476, %v474
        %v507 = vpack.c.b16 %v479, %v477
        %v508 = vpack.c.b16 %v480, %v478
        %v509 = vpack.c.b16 %v483, %v481
        %v510 = vpack.c.b16 %v484, %v482
        %v511 = vpack.c.b16 %v487, %v485
        %v512 = vpack.c.b16 %v488, %v486
        %v513 = vpack.c.b16 %v491, %v489
        %v514 = vpack.c.b16 %v492, %v490
        %v515 = vpack.c.b16 %v495, %v493
        %v516 = vpack.c.b16 %v496, %v494
        %v517 = vpack.c.b16 %v499, %v497
        %v518 = vpack.c.b16 %v500, %v498
        %v519 = vpack.c.b16 %v503, %v501
        %v520 = vpack.c.b16 %v504, %v502
        %537 = vmatpush.bf16.msra.mxu0 %v519
        %538 = vmatpush.bf16.msra.mxu0 %v517
        %539 = vmatpush.bf16.msra.mxu0 %v515
        %540 = vmatpush.bf16.msra.mxu0 %v513
        %541 = vmatpush.bf16.msra.mxu0 %v511
        %542 = vmatpush.bf16.msra.mxu0 %v509
        %543 = vmatpush.bf16.msra.mxu0 %v507
        %544 = vmatpush.bf16.msra.mxu0 %v505
        %545 = vmatmul.bf16.gmra.mxu0 %v441
        %v546 = vpop.f32.mrf.mxu0
        %v547 = vadd.f32 %v405, %v546
        %v548 = vpop.f32.mrf.mxu0
        %v549 = vadd.f32 %v405, %v548
        %550 = vmatmul.bf16.gmra.mxu0 %v442
        %v551 = vpop.f32.mrf.mxu0
        %v552 = vadd.f32 %v405, %v551
        %v553 = vpop.f32.mrf.mxu0
        %v554 = vadd.f32 %v405, %v553
        %555 = vmatmul.bf16.gmra.mxu0 %v443
        %v556 = vpop.f32.mrf.mxu0
        %v557 = vadd.f32 %v405, %v556
        %v558 = vpop.f32.mrf.mxu0
        %v559 = vadd.f32 %v405, %v558
        %560 = vmatmul.bf16.gmra.mxu0 %v444
        %v561 = vpop.f32.mrf.mxu0
        %v562 = vadd.f32 %v405, %v561
        %v563 = vpop.f32.mrf.mxu0
        %v564 = vadd.f32 %v405, %v563
        %565 = vmatmul.bf16.gmra.mxu0 %v445
        %v566 = vpop.f32.mrf.mxu0
        %v567 = vadd.f32 %v405, %v566
        %v568 = vpop.f32.mrf.mxu0
        %v569 = vadd.f32 %v405, %v568
        %570 = vmatmul.bf16.gmra.mxu0 %v446
        %v571 = vpop.f32.mrf.mxu0
        %v572 = vadd.f32 %v405, %v571
        %v573 = vpop.f32.mrf.mxu0
        %v574 = vadd.f32 %v405, %v573
        %575 = vmatmul.bf16.gmra.mxu0 %v447
        %v576 = vpop.f32.mrf.mxu0
        %v577 = vadd.f32 %v405, %v576
        %v578 = vpop.f32.mrf.mxu0
        %v579 = vadd.f32 %v405, %v578
        %580 = vmatmul.bf16.gmra.mxu0 %v448
        %v581 = vpop.f32.mrf.mxu0
        %v582 = vadd.f32 %v405, %v581
        %v583 = vpop.f32.mrf.mxu0
        %v584 = vadd.f32 %v405, %v583
        %585 = vdwg.mxu0
        %586 = vmatpush.bf16.msra.mxu0 %v520
        %587 = vmatpush.bf16.msra.mxu0 %v518
        %588 = vmatpush.bf16.msra.mxu0 %v516
        %589 = vmatpush.bf16.msra.mxu0 %v514
        %590 = vmatpush.bf16.msra.mxu0 %v512
        %591 = vmatpush.bf16.msra.mxu0 %v510
        %592 = vmatpush.bf16.msra.mxu0 %v508
        %593 = vmatpush.bf16.msra.mxu0 %v506
        %594 = vmatmul.bf16.gmra.mxu0 %v441
        %v595 = vpop.f32.mrf.mxu0
        %v596 = vadd.f32 %v406, %v595
        %v597 = vpop.f32.mrf.mxu0
        %v598 = vadd.f32 %v406, %v597
        %599 = vmatmul.bf16.gmra.mxu0 %v442
        %v600 = vpop.f32.mrf.mxu0
        %v601 = vadd.f32 %v406, %v600
        %v602 = vpop.f32.mrf.mxu0
        %v603 = vadd.f32 %v406, %v602
        %604 = vmatmul.bf16.gmra.mxu0 %v443
        %v605 = vpop.f32.mrf.mxu0
        %v606 = vadd.f32 %v406, %v605
        %v607 = vpop.f32.mrf.mxu0
        %v608 = vadd.f32 %v406, %v607
        %609 = vmatmul.bf16.gmra.mxu0 %v444
        %v610 = vpop.f32.mrf.mxu0
        %v611 = vadd.f32 %v406, %v610
        %v612 = vpop.f32.mrf.mxu0
        %v613 = vadd.f32 %v406, %v612
        %614 = vmatmul.bf16.gmra.mxu0 %v445
        %v615 = vpop.f32.mrf.mxu0
        %v616 = vadd.f32 %v406, %v615
        %v617 = vpop.f32.mrf.mxu0
        %v618 = vadd.f32 %v406, %v617
        %619 = vmatmul.bf16.gmra.mxu0 %v446
        %v620 = vpop.f32.mrf.mxu0
        %v621 = vadd.f32 %v406, %v620
        %v622 = vpop.f32.mrf.mxu0
        %v623 = vadd.f32 %v406, %v622
        %624 = vmatmul.bf16.gmra.mxu0 %v447
        %v625 = vpop.f32.mrf.mxu0
        %v626 = vadd.f32 %v406, %v625
        %v627 = vpop.f32.mrf.mxu0
        %v628 = vadd.f32 %v406, %v627
        %629 = vmatmul.bf16.gmra.mxu0 %v448
        %v630 = vpop.f32.mrf.mxu0
        %v631 = vadd.f32 %v406, %v630
        %v632 = vpop.f32.mrf.mxu0
        %v633 = vadd.f32 %v406, %v632
        %634 = vdwg.mxu0
        %v635 = vmax.f32 %v547, 0.0
        %v636 = vmax.f32 %v549, 0.0
        %v637 = vmax.f32 %v552, 0.0
        %v638 = vmax.f32 %v554, 0.0
        %v639 = vmax.f32 %v557, 0.0
        %v640 = vmax.f32 %v559, 0.0
        %v641 = vmax.f32 %v562, 0.0
        %v642 = vmax.f32 %v564, 0.0
        %v643 = vmax.f32 %v567, 0.0
        %v644 = vmax.f32 %v569, 0.0
        %v645 = vmax.f32 %v572, 0.0
        %v646 = vmax.f32 %v574, 0.0
        %v647 = vmax.f32 %v577, 0.0
        %v648 = vmax.f32 %v579, 0.0
        %v649 = vmax.f32 %v582, 0.0
        %v650 = vmax.f32 %v584, 0.0
        %v651 = vpack.c.bf16 %v636, %v635
        %v652 = vpack.c.bf16 %v638, %v637
        %v653 = vpack.c.bf16 %v640, %v639
        %v654 = vpack.c.bf16 %v642, %v641
        %v655 = vpack.c.bf16 %v644, %v643
        %v656 = vpack.c.bf16 %v646, %v645
        %v657 = vpack.c.bf16 %v648, %v647
        %v658 = vpack.c.bf16 %v650, %v649
        %v659 = vld [vmem:[#allocation2] sm:$0xf]
        %v660 = vld [vmem:[#allocation2 + $0x4] sm:$0xf]
        %v663 = vunpack.c.l.b16 %v659
        %v664 = vunpack.c.l.b16 %v660
        %v665 = vpack.c.b16 %v664, %v663
        %667 = vmatpush.bf16.xpose.msra.mxu0 %v658
        %668 = vmatpush.bf16.xpose.msra.mxu0 %v657
        %669 = vmatpush.bf16.xpose.msra.mxu0 %v656
        %670 = vmatpush.bf16.xpose.msra.mxu0 %v655
        %671 = vmatpush.bf16.xpose.msra.mxu0 %v654
        %672 = vmatpush.bf16.xpose.msra.mxu0 %v653
        %673 = vmatpush.bf16.xpose.msra.mxu0 %v652
        %674 = vmatpush.bf16.xpose.msra.mxu0 %v651
        %675 = vmatmul.bf16.gmra.mxu0 %v665
        %v676 = vpop.f32.mrf.mxu0
        %v677 = vadd.f32 0.0, %v676
        %v678 = vpop.f32.mrf.mxu0
        %v679 = vadd.f32 0.0, %v678
        %680 = vdwg.mxu0
        %vm683 = vcmp.ge.s32.totalorder %v677, 0
        %vm684 = vcmp.ge.s32.totalorder %v679, 0
        %v685 = vsub.s32 2147483648, %v677
        %v686 = vsub.s32 2147483648, %v679
        %v687 = vsel %vm683, %v677, %v685
        %v688 = vsel %vm684, %v679, %v686
        loop: start=0, step=1, limit=32
        $region61: #{tpu_custom_call.1} parent=43 // loop_pre_header
          _
        $region62: #{tpu_custom_call.1} parent=43 // loop_header
          %s690 = sphi 0, %s694
          %p691 = scmp.ge.s32.totalorder %s690, 32
          %v695 = vphi 2147483648, %v716
          %v696 = vphi 2147483647, %v717
        $region63: #{tpu_custom_call.1} parent=43 // loop_header_branch
          %693 = sbr.rel (%p691) target = $region67
        $region64: #{tpu_custom_call.1} parent=43 // loop_body
          %v697 = vand.u32 %v695, %v696
          %v698 = vxor.u32 %v695, %v696
          %v699 = vshra.s32 %v698, 1
          %v700 = vadd.s32 %v697, %v699
          %vm701 = vcmp.ge.s32.totalorder %v687, %v700
          %vm702 = vcmp.ge.s32.totalorder %v688, %v700
          %v703 = vsel %vm701, 1, 0
          %v704 = vsel %vm702, 1, 0
          %v705 = vcvt.s32.f32 %v703
          %v706 = vcvt.s32.f32 %v704
          %v707 = vadd.f32 %v705, %v706
          %v708 = vrot.slane %v707, 4
          %v709 = vadd.f32 %v707, %v708
          %v710 = vrot.slane %v709, 2
          %v711 = vadd.f32 %v709, %v710
          %v712 = vrot.slane %v711, 1
          %v713 = vadd.f32 %v711, %v712
          %v714 = vstv %s358
          %vm715 = vcmp.ge.f32.partialorder %v713, %v714
          %v716 = vsel %vm715, %v700, %v695
          %v717 = vsel %vm715, %v696, %v700
        $region65: #{tpu_custom_call.1} parent=43 // loop_footer
          %s694 = sadd.s32 1, %s690
        $region66: #{tpu_custom_call.1} parent=43 // loop_footer_branch
          %689 = sbr.rel target = $region62
        $region67: #{tpu_custom_call.1} parent=43 // loop_exit
          _
        %vm718 = vcmp.gt.s32.totalorder %v687, %v695
        %vm719 = vcmp.gt.s32.totalorder %v688, %v695
        %vm720 = vcmp.eq.s32.totalorder %v687, %v695
        %vm721 = vcmp.eq.s32.totalorder %v688, %v695
        %v722 = vsel %vm718, 1, 0
        %v723 = vsel %vm719, 1, 0
        %v724 = vcvt.s32.f32 %v722
        %v725 = vcvt.s32.f32 %v723
        %v726 = vadd.f32 %v724, %v725
        %v727 = vrot.slane %v726, 4
        %v728 = vadd.f32 %v726, %v727
        %v729 = vrot.slane %v728, 2
        %v730 = vadd.f32 %v728, %v729
        %v731 = vrot.slane %v730, 1
        %v732 = vadd.f32 %v730, %v731
        %v733 = vlaneseq
        %v734 = vshrl.u32 %v733, 7
        %v735 = vadd.s32 %v734, 8
        %v736 = vlaneseq
        %v737 = vand.u32 %v736, 127
        %vm738 = vcmp.lt.s32.totalorder %v737, %v734
        %vm739 = vcmp.lt.s32.totalorder %v737, %v735
        %v740 = vsel %vm738, 1, 0
        %v741 = vsel %vm739, 1, 0
        %v742 = vcvt.s32.f32 %v740
        %v743 = vcvt.s32.f32 %v741
        %v744 = vpack.c.bf16 %v743, %v742
        %v745 = vsel %vm720, 1, 0
        %v746 = vsel %vm721, 1, 0
        %v747 = vcvt.s32.f32 %v745
        %v748 = vcvt.s32.f32 %v746
        %v749 = vpack.c.bf16 %v748, %v747
        %vm750 = vcmask 130048
        %v752 = vsel %vm750, %v744, 0
        %754 = vmatpush.bf16.msra.mxu0 0
        %755 = vmatpush.bf16.msra.mxu0 0
        %756 = vmatpush.bf16.msra.mxu0 0
        %757 = vmatpush.bf16.msra.mxu0 0
        %758 = vmatpush.bf16.msra.mxu0 0
        %759 = vmatpush.bf16.msra.mxu0 0
        %760 = vmatpush.bf16.msra.mxu0 0
        %761 = vmatpush.bf16.msra.mxu0 %v749
        %762 = vmatmul.bf16.gmra.mxu0 %v752
        %v763 = vpop.f32.mrf.mxu0
        %v764 = vadd.f32 0.0, %v763
        %v765 = vpop.f32.mrf.mxu0
        %v766 = vadd.f32 0.0, %v765
        %767 = vdwg.mxu0
        %v768 = vadd.f32 %v732, %v764
        %v769 = vadd.f32 %v732, %v766
        %v770 = vstv %s358
        %vm771 = vcmp.lt.f32.partialorder %v768, %v770
        %vm772 = vcmp.lt.f32.partialorder %v769, %v770
        %vm773 = vmand %vm720, %vm771
        %vm774 = vmand %vm721, %vm772
        %vm775 = vmor %vm718, %vm773
        %vm776 = vmor %vm719, %vm774
        %v777 = vsel %vm775, 1.0, 0.0
        %v778 = vsel %vm776, 1.0, 0.0
        %s779 = smul.u32 %s40, 128
        %v780 = vstv %s779
        %v781 = vadd.s32 %v737, %v780
        %vm782 = vcmp.lt.s32.totalorder %v781, 8
        %v783 = vsel %vm782, 1, 0
        %v784 = vcvt.s32.f32 %v783
        %v785 = vmul.f32 %v777, %v784
        %v786 = vmul.f32 %v778, %v784
        %v787 = vmax.f32 %v677, %v679
        %v788 = vrot.slane %v787, 4
        %v789 = vmax.f32 %v787, %v788
        %v790 = vrot.slane %v789, 2
        %v791 = vmax.f32 %v789, %v790
        %v792 = vrot.slane %v791, 1
        %v793 = vmax.f32 %v791, %v792
        %v794 = vsub.f32 %v677, %v793
        %v795 = vsub.f32 %v679, %v793
        %v796 = vmul.f32 %v794, 1.442695
        %v797 = vpow.pop %v796
        %v798 = vmul.f32 %v795, 1.442695
        %v799 = vpow.pop %v798
        %v800 = vadd.f32 %v797, %v799
        %v801 = vrot.slane %v800, 4
        %v802 = vadd.f32 %v800, %v801
        %v803 = vrot.slane %v802, 2
        %v804 = vadd.f32 %v802, %v803
        %v805 = vrot.slane %v804, 1
        %v806 = vadd.f32 %v804, %v805
        %v807 = vrcp.pop %v806
        %v808 = vmul.f32 %v797, %v807
        %v809 = vmul.f32 %v799, %v807
        %v810 = vmul.f32 %v808, %v785
        %v811 = vmul.f32 %v809, %v786
        %v812 = vld [vmem:[%s354] sm:$0xff]
        %v813 = vld [vmem:[%s354 + $0x8] sm:$0xff]
        %v814 = vpack.c.bf16 %v811, %v810
        %v815 = vpack.c.bf16 %v598, %v596
        %v816 = vpack.c.bf16 %v603, %v601
        %v817 = vpack.c.bf16 %v608, %v606
        %v818 = vpack.c.bf16 %v613, %v611
        %v819 = vpack.c.bf16 %v618, %v616
        %v820 = vpack.c.bf16 %v623, %v621
        %v821 = vpack.c.bf16 %v628, %v626
        %v822 = vpack.c.bf16 %v633, %v631
        %823 = vmatpush.bf16.msra.mxu0 %v822
        %824 = vmatpush.bf16.msra.mxu0 %v821
        %825 = vmatpush.bf16.msra.mxu0 %v820
        %826 = vmatpush.bf16.msra.mxu0 %v819
        %827 = vmatpush.bf16.msra.mxu0 %v818
        %828 = vmatpush.bf16.msra.mxu0 %v817
        %829 = vmatpush.bf16.msra.mxu0 %v816
        %830 = vmatpush.bf16.msra.mxu0 %v815
        %831 = vmatmul.bf16.gmra.mxu0 %v814
        %v832 = vpop.f32.mrf.mxu0
        %v833 = vadd.f32 0.0, %v832
        %v834 = vpop.f32.mrf.mxu0
        %v835 = vadd.f32 0.0, %v834
        %836 = vdwg.mxu0
        %v837 = vadd.f32 %v812, %v833
        %v838 = vadd.f32 %v813, %v835
        %839 = vst [vmem:[%s354] sm:$0xff] %v837
        %840 = vst [vmem:[%s354 + $0x8] sm:$0xff] %v838
        // Predicated region
        $region68: #{tpu_custom_call.1} parent=43 // pred_check
          %p841 = pneg %p359
        $region69: #{tpu_custom_call.1} parent=43 // pred_check_branch
          %843 = sbr.rel (%p841) target = $region71
        $region70: #{tpu_custom_call.1} parent=43 // pred_region
          %v844 = vld [vmem:[%s354] sm:$0xff]
          %v845 = vld [vmem:[%s354 + $0x8] sm:$0xff]
          %v846 = vld [vmem:[%s5] sm:$0x1]
          %v848 = vperm.slane %v846, 0
          %v850 = vmul.f32 %v844, %v848
          %v851 = vmul.f32 %v845, %v848
          %v852 = vld [vmem:[%s6] sm:$0x1]
          %v854 = vperm.slane %v852, 0
          %v856 = vadd.f32 %v850, %v854
          %v857 = vadd.f32 %v851, %v854
          %v858 = vmax.f32 %v856, 0.0
          %v859 = vmax.f32 %v857, 0.0
          %v860 = vld [vmem:[%s305] sm:$0xff]
          %v861 = vld [vmem:[%s305 + $0x8] sm:$0xff]
          %v862 = vadd.f32 %v858, %v860
          %v863 = vadd.f32 %v859, %v861
          %864 = vst [vmem:[%s354] sm:$0xff] %v862
          %865 = vst [vmem:[%s354 + $0x8] sm:$0xff] %v863
        $region71: #{tpu_custom_call.1} parent=43 // pred_fallthru
          _
        %s866 = sand.u32 %s193, 1
        %s867 = scalar_lea.sflag [#allocation7], %s866
        %s868 = sand.u32 %s193, 1
        %s869 = smul.addr %s868, 16
        %s870 = scalar_lea.vmem [#allocation11], %s869
        // Predicated region
        $region72: #{tpu_custom_call.1} parent=43 // pred_check
          %p871 = pneg %p203
        $region73: #{tpu_custom_call.1} parent=43 // pred_check_branch
          %873 = sbr.rel (%p871) target = $region75
        $region74: #{tpu_custom_call.1} parent=43 // pred_region
          %875 = vsyncadd %s867, 0
          %s876 = smul.addr %s39, 2
          %s877 = smul.addr %s876, 8
          %s878 = scalar_lea.hbm %s7, %s877
          %s879 = sshll.u32 %s870, 4
          %s880 = int_to_ptr.vmem [resolvable:$true] %s879
          %s881 = sshll.u32 %s878, 4
          %s882 = int_to_ptr.hbm [resolvable:$true] %s881
          %887 = dma.vmem_to_hbm [thread:$0]  %s880, 256, %s882, %s867, 128, 128, 8
        $region75: #{tpu_custom_call.1} parent=43 // pred_fallthru
          _
      $region44: #{tpu_custom_call.1} parent=5 // pred_fallthru
        _
      %p888 = scmp.le.s32.totalorder 2, %s30
      // Predicated region
      $region76: #{tpu_custom_call.1} parent=5 // pred_check
        %p889 = pneg %p888
      $region77: #{tpu_custom_call.1} parent=5 // pred_check_branch
        %891 = sbr.rel (%p889) target = $region79
      $region78: #{tpu_custom_call.1} parent=5 // pred_region
        %s892 = ssub.s32 %s30, 2
        // Predicated region
        $region80: #{tpu_custom_call.1} parent=78 // pred_check
          %p893 = pneg %p209
        $region81: #{tpu_custom_call.1} parent=78 // pred_check_branch
          %895 = sbr.rel (%p893) target = $region83
        $region82: #{tpu_custom_call.1} parent=78 // pred_region
          %s896 = sand.u32 %s194, 1
          %s897 = scalar_lea.sflag [#allocation7], %s896
          %s898 = sand.u32 %s194, 1
          %s899 = smul.addr %s898, 16
          %s900 = scalar_lea.vmem [#allocation11], %s899
          %902 = dma.done %s897, 256
        $region83: #{tpu_custom_call.1} parent=78 // pred_fallthru
          _
      $region79: #{tpu_custom_call.1} parent=5 // pred_fallthru
        _
    $region6: #{tpu_custom_call.1} parent=1 // loop_footer
      %s34 = sadd.s32 1, %s30
    $region7: #{tpu_custom_call.1} parent=1 // loop_footer_branch
      %29 = sbr.rel target = $region3
    $region8: #{tpu_custom_call.1} parent=1 // loop_exit
      _
    %903 = vsyncpa [#allocation6], 1
    %s904 = scalar_lea.sflag [#allocation6], 1
    %905 = vsyncpa %s904, 1
    %906 = vsyncpa [#allocation9], 1
    %s907 = scalar_lea.sflag [#allocation9], 1
    %908 = vsyncpa %s907, 1
    %909 = vsyncpa [#allocation7], 1
    %s910 = scalar_lea.sflag [#allocation7], 1
    %911 = vsyncpa %s910, 1

</llo_original>
